<compile_context>
chip_gen: v6e
topology: v6e:2x2x1
jax: 0.10.0
libtpu: 0.0.40
codegen_flags: <defaults>
</compile_context>

<pallas_src>
import functools

import jax
import jax.numpy as jnp
import numpy as np
from jax import lax
from jax.experimental import pallas as pl
from jax.experimental.pallas import tpu as pltpu


def _tconv_kernel(x_ref, w_ref, b_ref, o_ref, *, c_out, kt, N, L, act):
    # x_ref : (1, c_in, T*N)   one batch row, resident in VMEM
    # w_ref : (co2, kt*c_in)   fused conv + residual/align weights (resident)
    # b_ref : (co2, 1)         fused bias, fp32 (resident)
    # o_ref : (1, c_out, L)    L = T_out * N, lane-dense flattened output
    # Gather the kt temporal taps as static lane slices (tap k starts at lane
    # k*N) and form the (kt*c_in, L) im2col operand in VMEM.
    taps = [x_ref[0, :, pl.ds(k * N, L)] for k in range(kt)]
    xi = jnp.concatenate(taps, axis=0)                          # (kt*c_in, L)

    # Single fused MXU matmul, fp32 accumulation; bias broadcast over lanes.
    acc = jnp.dot(w_ref[...], xi, preferred_element_type=jnp.float32)
    acc = acc + b_ref[...]                                      # (co2, L) fp32

    # Residual is already folded into acc[:c_out]; epilogue in fp32.
    if act == 'GLU':
        out = acc[:c_out] * jax.nn.sigmoid(acc[c_out:])
    elif act == 'sigmoid':
        out = jax.nn.sigmoid(acc)
    else:  # relu (module default)
        out = jnp.maximum(acc, 0.0)
    o_ref[0] = out.astype(o_ref.dtype)


def temporal_conv_layer_forward(x, conv_w, conv_b, kt, c_out, act='GLU',
                                align_w=None, align_b=None,
                                compute_dtype=jnp.float32,
                                out_dtype=None,
                                vmem_limit_bytes=None):
    """Pallas forward pass of temporal_conv_layer.

    x       : (B, c_in, T, N) float32 (NCHW, as in the PyTorch module)
    conv_w  : (co2, c_in, kt, 1)   co2 = 2*c_out if act == 'GLU' else c_out
    conv_b  : (co2,)
    align_w : (c_out, c_in) or (c_out, c_in, 1, 1)  [only when c_in > c_out]
    align_b : (c_out,)                              [only when c_in > c_out]
    returns : (B, c_out, T - kt + 1, N)
    """
    B, c_in, T, N = x.shape
    T_out = T - kt + 1
    co2 = 2 * c_out if act == 'GLU' else c_out
    ktc = kt * c_in
    L = T_out * N
    out_dtype = x.dtype if out_dtype is None else out_dtype

    # --- fused weights: conv + residual/align folded into one matmul ---
    # w2[o, k*c_in + ci] = conv_w[o, ci, k, 0]
    w2 = jnp.transpose(conv_w[..., 0].astype(jnp.float32), (0, 2, 1))
    w2 = w2.reshape(co2, ktc)
    b2 = conv_b.astype(jnp.float32)
    if c_in > c_out:
        res_w = align_w.reshape(c_out, c_in).astype(jnp.float32)
        res_b = align_b.reshape(c_out).astype(jnp.float32)
    else:
        # channel zero-pad (c_in < c_out) or identity (c_in == c_out)
        res_w = jnp.eye(c_out, c_in, dtype=jnp.float32)
        res_b = jnp.zeros((c_out,), jnp.float32)
    # align(x)[:, :, kt-1:, :] == tap (kt-1) of the im2col operand.
    w2 = w2.at[:c_out, (kt - 1) * c_in:].add(res_w)
    b2 = b2.at[:c_out].add(res_b)
    w2 = w2.astype(compute_dtype)
    b2 = b2.reshape(co2, 1)                       # bias stays fp32

    # Free contiguous collapse of (T, N) into the lane axis; no slab, no pad,
    # no extra HBM pass (cast is a no-op for the default fp32 path).
    x_flat = x.reshape(B, c_in, T * N).astype(compute_dtype)

    kernel = functools.partial(_tconv_kernel, c_out=c_out, kt=kt, N=N, L=L,
                               act=act)

    compiler_kwargs = dict(dimension_semantics=("parallel",))
    if vmem_limit_bytes is not None:
        compiler_kwargs["vmem_limit_bytes"] = vmem_limit_bytes

    out_flat = pl.pallas_call(
        kernel,
        out_shape=jax.ShapeDtypeStruct((B, c_out, L), out_dtype),
        grid=(B,),
        in_specs=[
            pl.BlockSpec((1, c_in, T * N), lambda b: (b, 0, 0)),  # streamed once/batch
            pl.BlockSpec((co2, ktc), lambda b: (0, 0)),           # resident weights
            pl.BlockSpec((co2, 1), lambda b: (0, 0)),             # resident bias
        ],
        out_specs=pl.BlockSpec((1, c_out, L), lambda b: (b, 0, 0)),
        compiler_params=pltpu.CompilerParams(**compiler_kwargs),
    )(x_flat, w2, b2)

    # Free contiguous reshape back to NCHW.
    return out_flat.reshape(B, c_out, T_out, N)


def _reference_forward(x, conv_w, conv_b, kt, c_out, act='GLU',
                       align_w=None, align_b=None):
    """Pure-JAX reference matching the PyTorch module."""
    c_in = x.shape[1]
    if c_in > c_out:
        aw = align_w.reshape(c_out, c_in)
        x_al = jnp.einsum('oc,bctn->botn', aw, x) \
            + align_b.reshape(-1)[None, :, None, None]
    elif c_in < c_out:
        x_al = jnp.pad(x, ((0, 0), (0, c_out - c_in), (0, 0), (0, 0)))
    else:
        x_al = x
    x_in = x_al[:, :, kt - 1:, :]
    conv = lax.conv_general_dilated(
        x, conv_w, window_strides=(1, 1), padding='VALID',
        dimension_numbers=('NCHW', 'OIHW', 'NCHW'))
    conv = conv + conv_b[None, :, None, None]
    if act == 'GLU':
        return (conv[:, :c_out] + x_in) * jax.nn.sigmoid(conv[:, c_out:])
    if act == 'sigmoid':
        return jax.nn.sigmoid(conv + x_in)
    return jnp.maximum(conv + x_in, 0.0)


if __name__ == "__main__":
    key = jax.random.PRNGKey(0)

    # --- GLU branch, c_in < c_out (standard STGCN config) ---
    B, c_in, c_out, kt, T, N = 2, 4, 8, 3, 16, 16
    co2 = 2 * c_out
    k1, k2, k3, key = jax.random.split(key, 4)
    x = jax.random.normal(k1, (B, c_in, T, N), dtype=jnp.float32)
    conv_w = jax.random.normal(k2, (co2, c_in, kt, 1), dtype=jnp.float32) * 0.1
    conv_b = jax.random.normal(k3, (co2,), dtype=jnp.float32) * 0.1

    out = temporal_conv_layer_forward(x, conv_w, conv_b, kt, c_out, act='GLU')
    out = jax.block_until_ready(out)
    ref = _reference_forward(x, conv_w, conv_b, kt, c_out, act='GLU')
    np.testing.assert_allclose(np.asarray(out), np.asarray(ref),
                               rtol=2e-5, atol=2e-5)

    # --- relu branch, c_in > c_out (exercises the folded 1x1 align conv) ---
    B2, c_in2, c_out2, kt2, T2, N2 = 2, 8, 4, 3, 16, 16
    k1, k2, k3, k4, k5, key = jax.random.split(key, 6)
    x2 = jax.random.normal(k1, (B2, c_in2, T2, N2), dtype=jnp.float32)
    cw2 = jax.random.normal(k2, (c_out2, c_in2, kt2, 1), dtype=jnp.float32) * 0.1
    cb2 = jax.random.normal(k3, (c_out2,), dtype=jnp.float32) * 0.1
    aw2 = jax.random.normal(k4, (c_out2, c_in2), dtype=jnp.float32) * 0.1
    ab2 = jax.random.normal(k5, (c_out2,), dtype=jnp.float32) * 0.1

    out2 = temporal_conv_layer_forward(x2, cw2, cb2, kt2, c_out2, act='relu',
                                       align_w=aw2, align_b=ab2)
    out2 = jax.block_until_ready(out2)
    ref2 = _reference_forward(x2, cw2, cb2, kt2, c_out2, act='relu',
                              align_w=aw2, align_b=ab2)
    np.testing.assert_allclose(np.asarray(out2), np.asarray(ref2),
                               rtol=2e-5, atol=2e-5)

    # --- sigmoid branch, c_in == c_out (identity residual fold) ---
    B3, c3, kt3, T3, N3 = 2, 8, 2, 12, 16
    k1, k2, k3, key = jax.random.split(key, 4)
    x3 = jax.random.normal(k1, (B3, c3, T3, N3), dtype=jnp.float32)
    cw3 = jax.random.normal(k2, (c3, c3, kt3, 1), dtype=jnp.float32) * 0.1
    cb3 = jax.random.normal(k3, (c3,), dtype=jnp.float32) * 0.1

    out3 = temporal_conv_layer_forward(x3, cw3, cb3, kt3, c3, act='sigmoid')
    out3 = jax.block_until_ready(out3)
    ref3 = _reference_forward(x3, cw3, cb3, kt3, c3, act='sigmoid')
    np.testing.assert_allclose(np.asarray(out3), np.asarray(ref3),
                               rtol=2e-5, atol=2e-5)

    print("KERNEL_OK")
</pallas_src>

<mosaic_0001>
module attributes {stable_mosaic.version = 11 : i64} {
  func.func @_tconv_kernel(%arg0: i32, %arg1: memref<1x4x256xf32, #tpu.memory_space<vmem>>, %arg2: memref<16x12xf32, #tpu.memory_space<vmem>>, %arg3: memref<16x1xf32, #tpu.memory_space<vmem>>, %arg4: memref<1x8x224xf32, #tpu.memory_space<vmem>>) attributes {dimension_semantics = [#tpu.dimension_semantics<parallel>], iteration_bounds = array<i64: 2>, scalar_prefetch = 0 : i64, scratch_operands = 0 : i64, tpu.core_type = #tpu.core_type<tc>, window_params = [{transform_indices = @transform_0, window_bounds = array<i64: 1, 4, 256>}, {pipeline_mode = #tpu.pipeline_mode<synchronous>, transform_indices = @transform_1, window_bounds = array<i64: 16, 12>}, {pipeline_mode = #tpu.pipeline_mode<synchronous>, transform_indices = @transform_2, window_bounds = array<i64: 16, 1>}, {transform_indices = @transform_3, window_bounds = array<i64: 1, 8, 224>}]} {
    %c0 = arith.constant 0 : index
    %c0_0 = arith.constant 0 : index
    %c0_1 = arith.constant 0 : index
    %0 = vector.load %arg1[%c0, %c0_0, %c0_1] : memref<1x4x256xf32, #tpu.memory_space<vmem>>, vector<1x4x224xf32>
    %1 = vector.shape_cast %0 : vector<1x4x224xf32> to vector<4x224xf32>
    %c0_2 = arith.constant 0 : index
    %c0_3 = arith.constant 0 : index
    %c16 = arith.constant 16 : index
    %2 = vector.load %arg1[%c0_2, %c0_3, %c16] : memref<1x4x256xf32, #tpu.memory_space<vmem>>, vector<1x4x224xf32>
    %3 = vector.shape_cast %2 : vector<1x4x224xf32> to vector<4x224xf32>
    %c0_4 = arith.constant 0 : index
    %c0_5 = arith.constant 0 : index
    %c32 = arith.constant 32 : index
    %4 = vector.load %arg1[%c0_4, %c0_5, %c32] : memref<1x4x256xf32, #tpu.memory_space<vmem>>, vector<1x4x224xf32>
    %5 = vector.shape_cast %4 : vector<1x4x224xf32> to vector<4x224xf32>
    %6 = tpu.concatenate %1, %3, %5 in 0 : vector<4x224xf32>, vector<4x224xf32>, vector<4x224xf32> -> vector<12x224xf32>
    %c0_6 = arith.constant 0 : index
    %c0_7 = arith.constant 0 : index
    %7 = vector.load %arg2[%c0_6, %c0_7] : memref<16x12xf32, #tpu.memory_space<vmem>>, vector<16x12xf32>
    %cst = arith.constant dense<0.000000e+00> : vector<16x224xf32>
    %8 = tpu.matmul %7, %6, %cst {dimension_numbers = #tpu.dot_dimension_numbers<[1], [0], [0], [1], [0, 0, 1, 1], [], []>} : vector<16x12xf32>, vector<12x224xf32>, vector<16x224xf32> -> vector<16x224xf32>
    %c0_8 = arith.constant 0 : index
    %c0_9 = arith.constant 0 : index
    %9 = vector.load %arg3[%c0_8, %c0_9] : memref<16x1xf32, #tpu.memory_space<vmem>>, vector<16x1xf32>
    %10 = vector.broadcast %9 : vector<16x1xf32> to vector<16x224xf32>
    %11 = arith.addf %8, %10 : vector<16x224xf32>
    %12 = vector.extract_strided_slice %11 {offsets = [0, 0], sizes = [8, 224], strides = [1, 1]} : vector<16x224xf32> to vector<8x224xf32>
    %13 = vector.extract_strided_slice %11 {offsets = [8, 0], sizes = [8, 224], strides = [1, 1]} : vector<16x224xf32> to vector<8x224xf32>
    %14 = arith.negf %13 : vector<8x224xf32>
    %15 = math.exp %14 : vector<8x224xf32>
    %cst_10 = arith.constant 1.000000e+00 : f32
    %16 = vector.broadcast %cst_10 : f32 to vector<8x224xf32>
    %17 = arith.addf %16, %15 : vector<8x224xf32>
    %18 = arith.divf %16, %17 : vector<8x224xf32>
    %19 = arith.mulf %12, %18 : vector<8x224xf32>
    %c0_11 = arith.constant 0 : index
    %c0_12 = arith.constant 0 : index
    %c0_13 = arith.constant 0 : index
    %20 = vector.load %arg4[%c0_11, %c0_12, %c0_13] : memref<1x8x224xf32, #tpu.memory_space<vmem>>, vector<1x8x224xf32>
    %21 = vector.shape_cast %20 : vector<1x8x224xf32> to vector<8x224xf32>
    %22 = vector.shape_cast %19 : vector<8x224xf32> to vector<1x8x224xf32>
    tpu.vector_store %arg4[%c0_11, %c0_12, %c0_13], %22 {strides = array<i32>} : memref<1x8x224xf32, #tpu.memory_space<vmem>>, vector<1x8x224xf32>,
    return
  }
  func.func @transform_0(%arg0: i32) -> (i32, i32, i32) {
    %c0_i32 = arith.constant 0 : i32
    %c0_i32_0 = arith.constant 0 : i32
    %c0_i32_1 = arith.constant 0 : i32
    return %arg0, %c0_i32, %c0_i32_0 : i32, i32, i32
  }
  func.func @transform_1(%arg0: i32) -> (i32, i32) {
    %c0_i32 = arith.constant 0 : i32
    %c0_i32_0 = arith.constant 0 : i32
    %c0_i32_1 = arith.constant 0 : i32
    return %c0_i32, %c0_i32_0 : i32, i32
  }
  func.func @transform_2(%arg0: i32) -> (i32, i32) {
    %c0_i32 = arith.constant 0 : i32
    %c0_i32_0 = arith.constant 0 : i32
    %c0_i32_1 = arith.constant 0 : i32
    return %c0_i32, %c0_i32_0 : i32, i32
  }
  func.func @transform_3(%arg0: i32) -> (i32, i32, i32) {
    %c0_i32 = arith.constant 0 : i32
    %c0_i32_0 = arith.constant 0 : i32
    %c0_i32_1 = arith.constant 0 : i32
    return %arg0, %c0_i32, %c0_i32_0 : i32, i32, i32
  }
}

</mosaic_0001>

<llo_original>
// kernel: tpu_custom_call.1
$region0: #{tpu_custom_call.1}
  #allocation0 [shape = 'u32[]', space=smem, size = 0x4, offset = 0x4, fixed_abs, tag = 'smem constant byte address 0x4 - core index']
  #allocation1 [shape = 'u32[144,128]{1,0:T(1,128)}', space=vmem, size = 0x12000, scoped, tag = 'internal scratch']
  %s0 = inlined_call_operand.vmem [shape: f32[2,4,256], index: 0, kind: input, shape index: {}]
  %s1 = inlined_call_operand.hbm [shape: f32[16,12], index: 1, kind: input, shape index: {}]
  %s2 = inlined_call_operand.vmem [shape: f32[16,1], index: 2, kind: input, shape index: {}]
  %s3 = inlined_call_operand.hbm [shape: f32[2,8,224], index: 3, kind: output, shape index: {}]
  %s4 = sld [smem:[#allocation0]]
  $region49: #{tpu_custom_call.1} parent=0
    _
  %s6 = ssub.s32 1, %s4
  %s7 = scalar_select 0, %s6, %s4
  $region1: #{tpu_custom_call.1} parent=0
    #allocation2 [shape = 'u8[8192]{0}', space=vmem, size = 0x2000, scoped, tag = 'input window, operand 1, single buffered']
    #allocation3 [shape = 's32[2]{0}', space=sflag, size = 0x8, scoped, tag = 'scoped memory for tpu_custom_call.1']
    #allocation4 [shape = 's32[2]{0}', space=sflag, size = 0x8, scoped, tag = 'scoped memory for tpu_custom_call.1']
    #allocation5 [shape = 'u8[16384]{0}', space=vmem, size = 0x4000, scoped, tag = 'output window, operand 0']
    %8 = vsyncpa [#allocation3], 0
    %9 = vsyncpa [#allocation4], 0
    %s10 = scalar_lea.sflag [#allocation4], 1
    %11 = vsyncpa %s10, 0
    loop: start=0, step=1, limit=4
    $region2: #{tpu_custom_call.1} parent=1 // loop_pre_header
      _
    $region3: #{tpu_custom_call.1} parent=1 // loop_header
      %s13 = sphi 0, %s17
      %p14 = scmp.ge.s32.totalorder %s13, 4
      %s23 = sphi 0, %s25
      %s26 = sphi 0, %s23
      %s27 = sphi 0, %s26
      %s43 = sphi 0, %s27
      %s47 = sphi 0, %s47
      %s49 = sphi 0, %s47
      %s50 = sphi 0, %s49
      %s64 = sphi 0, %s50
      %s68 = sphi 0, %s68
      %s70 = sphi 0, %s68
      %s71 = sphi 0, %s70
      %s85 = sphi 0, %s71
      %s91 = sphi 0, %s93
      %s94 = sphi 0, %s91
      %s95 = sphi 0, %s94
      %s111 = sphi 0, %s95
    $region4: #{tpu_custom_call.1} parent=1 // loop_header_branch
      %16 = sbr.rel (%p14) target = $region8
    $region5: #{tpu_custom_call.1} parent=1 // loop_body
      %s18 = ssub.s32 %s13, 1
      %s19 = ssub.s32 %s13, 2
      %s20 = sadd.s32 %s13, 1
      %s21 = ssub.s32 %s13, %s20
      %p22 = scmp.eq.s32.totalorder %s21, 0
      %s24 = sadd.s32 %s23, 1
      %s25 = scalar_select %p22, %s23, %s24
      %p28 = pneg %p22
      %p29 = scmp.eq.s32.totalorder %s13, 1
      %p30 = por %p28, %p29
      %p31 = scmp.ne.s32.totalorder %s23, %s26
      %p32 = scmp.eq.s32.totalorder %s13, 0
      %p33 = por %p31, %p32
      %p34 = scmp.ne.s32.totalorder %s23, %s26
      %p35 = scmp.eq.s32.totalorder %s18, 1
      %p36 = por %p34, %p35
      %p37 = scmp.ne.s32.totalorder %s26, %s27
      %p38 = scmp.eq.s32.totalorder %s18, 0
      %p39 = por %p37, %p38
      %p40 = scmp.ne.s32.totalorder %s26, %s27
      %p41 = scmp.eq.s32.totalorder %s19, 1
      %p42 = por %p40, %p41
      %p44 = scmp.ne.s32.totalorder %s27, %s43
      %p45 = scmp.eq.s32.totalorder %s19, 0
      %p46 = por %p44, %p45
      %s48 = sadd.s32 %s47, 1
      %p51 = scmp.eq.s32.totalorder %s13, 1
      %p52 = scmp.ne.s32.totalorder %s47, %s49
      %p53 = scmp.eq.s32.totalorder %s13, 0
      %p54 = por %p52, %p53
      %p55 = scmp.ne.s32.totalorder %s47, %s49
      %p56 = scmp.eq.s32.totalorder %s18, 1
      %p57 = por %p55, %p56
      %p58 = scmp.ne.s32.totalorder %s49, %s50
      %p59 = scmp.eq.s32.totalorder %s18, 0
      %p60 = por %p58, %p59
      %p61 = scmp.ne.s32.totalorder %s49, %s50
      %p62 = scmp.eq.s32.totalorder %s19, 1
      %p63 = por %p61, %p62
      %p65 = scmp.ne.s32.totalorder %s50, %s64
      %p66 = scmp.eq.s32.totalorder %s19, 0
      %p67 = por %p65, %p66
      %s69 = sadd.s32 %s68, 1
      %p72 = scmp.eq.s32.totalorder %s13, 1
      %p73 = scmp.ne.s32.totalorder %s68, %s70
      %p74 = scmp.eq.s32.totalorder %s13, 0
      %p75 = por %p73, %p74
      %p76 = scmp.ne.s32.totalorder %s68, %s70
      %p77 = scmp.eq.s32.totalorder %s18, 1
      %p78 = por %p76, %p77
      %p79 = scmp.ne.s32.totalorder %s70, %s71
      %p80 = scmp.eq.s32.totalorder %s18, 0
      %p81 = por %p79, %p80
      %p82 = scmp.ne.s32.totalorder %s70, %s71
      %p83 = scmp.eq.s32.totalorder %s19, 1
      %p84 = por %p82, %p83
      %p86 = scmp.ne.s32.totalorder %s71, %s85
      %p87 = scmp.eq.s32.totalorder %s19, 0
      %p88 = por %p86, %p87
      %s89 = ssub.s32 %s13, %s20
      %p90 = scmp.eq.s32.totalorder %s89, 0
      %s92 = sadd.s32 %s91, 1
      %s93 = scalar_select %p90, %s91, %s92
      %p96 = pneg %p90
      %p97 = scmp.eq.s32.totalorder %s13, 1
      %p98 = por %p96, %p97
      %p99 = scmp.ne.s32.totalorder %s91, %s94
      %p100 = scmp.eq.s32.totalorder %s13, 0
      %p101 = por %p99, %p100
      %p102 = scmp.ne.s32.totalorder %s91, %s94
      %p103 = scmp.eq.s32.totalorder %s18, 1
      %p104 = por %p102, %p103
      %p105 = scmp.ne.s32.totalorder %s94, %s95
      %p106 = scmp.eq.s32.totalorder %s18, 0
      %p107 = por %p105, %p106
      %p108 = scmp.ne.s32.totalorder %s94, %s95
      %p109 = scmp.eq.s32.totalorder %s19, 1
      %p110 = por %p108, %p109
      %p112 = scmp.ne.s32.totalorder %s95, %s111
      %p113 = scmp.eq.s32.totalorder %s19, 0
      %p114 = por %p112, %p113
      %p115 = scmp.le.s32.totalorder 1, %s13
      %p116 = scmp.lt.s32.totalorder %s13, 3
      %p117 = pnand %p115, %p116
      %p118 = pneg %p117
      // Predicated region
      $region9: #{tpu_custom_call.1} parent=5 // pred_check
        _
      $region10: #{tpu_custom_call.1} parent=5 // pred_check_branch
        %120 = sbr.rel (%p117) target = $region12
      $region11: #{tpu_custom_call.1} parent=5 // pred_region
        %s121 = ssub.s32 %s13, 1
        // Predicated region
        $region13: #{tpu_custom_call.1} parent=11 // pred_check
          %p122 = pneg %p60
        $region14: #{tpu_custom_call.1} parent=11 // pred_check_branch
          %124 = sbr.rel (%p122) target = $region16
        $region15: #{tpu_custom_call.1} parent=11 // pred_region
          %s126 = ssub.s32 256, 256
          %127 = vsyncadd [#allocation3], %s126
          %s128 = sshll.u32 [#allocation2], 4
          %s129 = int_to_ptr.vmem [resolvable:$true] %s128
          %134 = dma.hbm_to_vmem [thread:$0]  %s1, 256, %s129, [#allocation3], 128, 128, 8
        $region16: #{tpu_custom_call.1} parent=11 // pred_fallthru
          _
        // Predicated region
        $region17: #{tpu_custom_call.1} parent=11 // pred_check
          %p135 = pneg %p81
        $region18: #{tpu_custom_call.1} parent=11 // pred_check_branch
          %137 = sbr.rel (%p135) target = $region20
        $region19: #{tpu_custom_call.1} parent=11 // pred_region
          _
        $region20: #{tpu_custom_call.1} parent=11 // pred_fallthru
          _
      $region12: #{tpu_custom_call.1} parent=5 // pred_fallthru
        _
      %p138 = scmp.lt.s32.totalorder %s13, 2
      // Predicated region
      $region21: #{tpu_custom_call.1} parent=5 // pred_check
        %p139 = pneg %p138
      $region22: #{tpu_custom_call.1} parent=5 // pred_check_branch
        %141 = sbr.rel (%p139) target = $region24
      $region23: #{tpu_custom_call.1} parent=5 // pred_region
        // Predicated region
        $region25: #{tpu_custom_call.1} parent=23 // pred_check
          %p142 = pneg %p33
        $region26: #{tpu_custom_call.1} parent=23 // pred_check_branch
          %144 = sbr.rel (%p142) target = $region28
        $region27: #{tpu_custom_call.1} parent=23 // pred_region
          %p145 = scmp.lt.s32.totalorder %s13, 1
          %s146 = scalar_select %p145, %s13, 1
          %s147 = smul.addr %s146, 2
          %s148 = smul.addr %s147, 4
          %s149 = scalar_lea.vmem %s0, %s148
        $region28: #{tpu_custom_call.1} parent=23 // pred_fallthru
          _
      $region24: #{tpu_custom_call.1} parent=5 // pred_fallthru
        _
      %p150 = scmp.le.s32.totalorder 1, %s13
      %p151 = scmp.lt.s32.totalorder %s13, 3
      %p152 = pnand %p150, %p151
      %p153 = pneg %p152
      // Predicated region
      $region29: #{tpu_custom_call.1} parent=5 // pred_check
        _
      $region30: #{tpu_custom_call.1} parent=5 // pred_check_branch
        %155 = sbr.rel (%p152) target = $region32
      $region31: #{tpu_custom_call.1} parent=5 // pred_region
        %s156 = ssub.s32 %s13, 1
        // Predicated region
        $region33: #{tpu_custom_call.1} parent=31 // pred_check
          %p157 = pneg %p60
        $region34: #{tpu_custom_call.1} parent=31 // pred_check_branch
          %159 = sbr.rel (%p157) target = $region36
        $region35: #{tpu_custom_call.1} parent=31 // pred_region
          %160 = dma.done [#allocation3], 256
        $region36: #{tpu_custom_call.1} parent=31 // pred_fallthru
          _
        %p161 = scmp.lt.s32.totalorder %s18, 1
        %s162 = scalar_select %p161, %s18, 1
        %s163 = smul.addr %s162, 2
        %s164 = smul.addr %s163, 4
        %s165 = scalar_lea.vmem %s0, %s164
        %p166 = pneg %p39
        %p167 = pneg %p36
        %p168 = pneg %p60
        %p169 = pneg %p57
        %p170 = pneg %p81
        %p171 = pneg %p78
        %p172 = pneg %p107
        %p173 = pneg %p104
        %s174 = sand.u32 %s94, 1
        %s175 = scalar_lea.sflag [#allocation4], %s174
        %s176 = sand.u32 %s94, 1
        %s177 = smul.addr %s176, 16
        %s178 = scalar_lea.vmem [#allocation5], %s177
        %p179 = scmp.lt.s32.totalorder %s18, 1
        %s180 = scalar_select %p179, %s18, 1
        %s181 = smul.addr %s180, 2
        %s182 = smul.addr %s181, 4
        %s183 = scalar_lea.vmem %s0, %s182
        %v184 = vld [vmem:[%s183] sm:$0xff]
        %v186 = vcombine.high %v184, %v184
        %v188 = vcombine.low %v184, %v184
        %189 = vrot.lane.b32.xlu0 %v188, 112
        %v190 = vpop.permute.xlu0 %189
        %191 = vrot.lane.b32.xlu0 %v184, 112
        %v192 = vpop.permute.xlu0 %191
        %vm193 = vcmask 916480
        %v194 = vsel %vm193, %v190, %v192
        %197 = vrot.lane.b32.xlu0 %v184, 96
        %v198 = vpop.permute.xlu0 %197
        %199 = vrot.lane.b32.xlu0 %v186, 96
        %v200 = vpop.permute.xlu0 %199
        %vm201 = vcmask 785408
        %v202 = vsel %vm201, %v198, %v200
        %vm203 = vcmask 1043456
        %v204 = vsel %vm203, %v184, %v194
        %v205 = vsel %vm203, %v186, %v192
        %v206 = vld [vmem:[#allocation2] sm:$0xff]
        %v207 = vld [vmem:[#allocation2 + $0x8] sm:$0xff]
        %v208 = vld [vmem:[%s2] sm:$0xff]
        %v209 = vld [vmem:[%s2 + $0x8] sm:$0xff]
        %211 = vset.pattern.permute.xlu0 0
        %212 = vperm.xlu0 %211, %v208
        %v213 = vpop.permute.xlu0 %212
        %216 = vset.pattern.permute.xlu0 0
        %217 = vperm.xlu0 %216, %v209
        %v218 = vpop.permute.xlu0 %217
        %vm220 = vcmask 97280
        %v222 = vsel %vm220, %v206, 0
        %v225 = vsel %vm220, %v207, 0
        %v227 = vsel %vm203, %v202, 0
        %v229 = vsel %vm203, %v200, 0
        %231 = vmatprep.subr.mxu0 0.0
        %232 = vmatpush1.msra.mxu0 0.0
        %233 = vmatprep.subr.mxu0 0.0
        %234 = vmatpush1.msra.mxu0 0.0
        %235 = vmatprep.subr.mxu0 0.0
        %236 = vmatpush1.msra.mxu0 0.0
        %237 = vmatprep.subr.mxu0 0.0
        %238 = vmatpush1.msra.mxu0 0.0
        %239 = vmatprep.subr.mxu0 0.0
        %240 = vmatpush1.msra.mxu0 0.0
        %241 = vmatprep.subr.mxu0 0.0
        %242 = vmatpush1.msra.mxu0 0.0
        %243 = vmatprep.subr.mxu0 0.0
        %244 = vmatpush1.msra.mxu0 0.0
        %245 = vmatprep.subr.mxu0 0.0
        %246 = vmatpush1.msra.mxu0 0.0
        %247 = vmatprep.subr.mxu0 0.0
        %248 = vmatpush1.msra.mxu0 0.0
        %249 = vmatprep.subr.mxu0 0.0
        %250 = vmatpush1.msra.mxu0 0.0
        %251 = vmatprep.subr.mxu0 0.0
        %252 = vmatpush1.msra.mxu0 0.0
        %253 = vmatprep.subr.mxu0 0.0
        %254 = vmatpush1.msra.mxu0 0.0
        %255 = vmatprep.subr.mxu0 0.0
        %256 = vmatpush1.msra.mxu0 0.0
        %257 = vmatprep.subr.mxu0 0.0
        %258 = vmatpush1.msra.mxu0 0.0
        %259 = vmatprep.subr.mxu0 %v229
        %260 = vmatpush1.msra.mxu0 %v227
        %261 = vmatprep.subr.mxu0 %v205
        %262 = vmatpush1.msra.mxu0 %v204
        %263 = vmatprep.subr.mxu0 0.0
        %264 = vmatpush2.msra.mxu0 0.0
        %265 = vmatprep.subr.mxu0 0.0
        %266 = vmatpush2.msra.mxu0 0.0
        %267 = vmatprep.subr.mxu0 0.0
        %268 = vmatpush2.msra.mxu0 0.0
        %269 = vmatprep.subr.mxu0 0.0
        %270 = vmatpush2.msra.mxu0 0.0
        %271 = vmatprep.subr.mxu0 0.0
        %272 = vmatpush2.msra.mxu0 0.0
        %273 = vmatprep.subr.mxu0 0.0
        %274 = vmatpush2.msra.mxu0 0.0
        %275 = vmatprep.subr.mxu0 0.0
        %276 = vmatpush2.msra.mxu0 0.0
        %277 = vmatprep.subr.mxu0 0.0
        %278 = vmatpush2.msra.mxu0 0.0
        %279 = vmatprep.subr.mxu0 0.0
        %280 = vmatpush2.msra.mxu0 0.0
        %281 = vmatprep.subr.mxu0 0.0
        %282 = vmatpush2.msra.mxu0 0.0
        %283 = vmatprep.subr.mxu0 0.0
        %284 = vmatpush2.msra.mxu0 0.0
        %285 = vmatprep.subr.mxu0 0.0
        %286 = vmatpush2.msra.mxu0 0.0
        %287 = vmatprep.subr.mxu0 0.0
        %288 = vmatpush2.msra.mxu0 0.0
        %289 = vmatprep.subr.mxu0 0.0
        %290 = vmatpush2.msra.mxu0 0.0
        %291 = vmatprep.subr.mxu0 0.0
        %292 = vmatpush2.msra.mxu0 0.0
        %293 = vmatprep.subr.mxu0 0.0
        %294 = vmatpush2.msra.mxu0 0.0
        %295 = vmatprep.mubr.f32.mxu0 0.0
        %296 = vmatmul.mubr.f32.gmra.mxu0 %v222
        %v297 = vpop.f32.mrf.mxu0
        %v298 = vadd.f32 %v213, %v297
        %v299 = vpop.f32.mrf.mxu0
        %v300 = vadd.f32 %v213, %v299
        %301 = vmatprep.mubr.f32.mxu0 0.0
        %302 = vmatmul.mubr.f32.gmra.mxu0 %v225
        %v303 = vpop.f32.mrf.mxu0
        %v304 = vadd.f32 %v218, %v303
        %v305 = vpop.f32.mrf.mxu0
        %v306 = vadd.f32 %v218, %v305
        %307 = vdwg.mxu0
        %v308 = vxor.u32 %v304, 2147483648
        %v309 = vxor.u32 %v306, 2147483648
        %v310 = vmul.f32 %v308, 1.442695
        %v311 = vpow.pop %v310
        %v312 = vmul.f32 %v309, 1.442695
        %v313 = vpow.pop %v312
        %v314 = vadd.f32 %v311, 1.0
        %v315 = vadd.f32 %v313, 1.0
        %v316 = vrcp.pop %v314
        %v317 = vmul.f32 1.0, %v316
        %v318 = vrcp.pop %v315
        %v319 = vmul.f32 1.0, %v318
        %v320 = vmul.f32 %v298, %v317
        %v321 = vmul.f32 %v300, %v319
        %322 = vst [vmem:[%s178] sm:$0xff] %v320
        %323 = vst.msk [vmem:[%s178 + $0x8] sm:$0xff] %vm201, %v321
        %s324 = sand.u32 %s94, 1
        %s325 = scalar_lea.sflag [#allocation4], %s324
        %s326 = sand.u32 %s94, 1
        %s327 = smul.addr %s326, 16
        %s328 = scalar_lea.vmem [#allocation5], %s327
        // Predicated region
        $region37: #{tpu_custom_call.1} parent=31 // pred_check
          %p329 = pneg %p104
        $region38: #{tpu_custom_call.1} parent=31 // pred_check_branch
          %331 = sbr.rel (%p329) target = $region40
        $region39: #{tpu_custom_call.1} parent=31 // pred_region
          %s333 = ssub.s32 256, 256
          %334 = vsyncadd %s325, %s333
          %s335 = smul.addr %s18, 2
          %s336 = smul.addr %s335, 128
          %s337 = scalar_lea.hbm %s3, %s336
          %s339 = sshll.u32 %s328, 4
          %s340 = int_to_ptr.vmem [resolvable:$true] %s339
          %342 = dma.vmem_to_hbm [thread:$0]  %s340, 256, %s337, %s325
        $region40: #{tpu_custom_call.1} parent=31 // pred_fallthru
          _
      $region32: #{tpu_custom_call.1} parent=5 // pred_fallthru
        _
      %p343 = scmp.le.s32.totalorder 2, %s13
      // Predicated region
      $region41: #{tpu_custom_call.1} parent=5 // pred_check
        %p344 = pneg %p343
      $region42: #{tpu_custom_call.1} parent=5 // pred_check_branch
        %346 = sbr.rel (%p344) target = $region44
      $region43: #{tpu_custom_call.1} parent=5 // pred_region
        %s347 = ssub.s32 %s13, 2
        // Predicated region
        $region45: #{tpu_custom_call.1} parent=43 // pred_check
          %p348 = pneg %p110
        $region46: #{tpu_custom_call.1} parent=43 // pred_check_branch
          %350 = sbr.rel (%p348) target = $region48
        $region47: #{tpu_custom_call.1} parent=43 // pred_region
          %s351 = sand.u32 %s95, 1
          %s352 = scalar_lea.sflag [#allocation4], %s351
          %s353 = sand.u32 %s95, 1
          %s354 = smul.addr %s353, 16
          %s355 = scalar_lea.vmem [#allocation5], %s354
          %356 = dma.done %s352, 256
        $region48: #{tpu_custom_call.1} parent=43 // pred_fallthru
          _
      $region44: #{tpu_custom_call.1} parent=5 // pred_fallthru
        _
    $region6: #{tpu_custom_call.1} parent=1 // loop_footer
      %s17 = sadd.s32 1, %s13
    $region7: #{tpu_custom_call.1} parent=1 // loop_footer_branch
      %12 = sbr.rel target = $region3
    $region8: #{tpu_custom_call.1} parent=1 // loop_exit
      _
    %357 = vsyncpa [#allocation3], 1
    %s358 = scalar_lea.sflag [#allocation3], 1
    %359 = vsyncpa %s358, 1
    %360 = vsyncpa [#allocation4], 1
    %s361 = scalar_lea.sflag [#allocation4], 1
    %362 = vsyncpa %s361, 1

</llo_original>
